<compile_context>
chip_gen: v7x
topology: tpu7x:2x2x1
jax: 0.10.0
libtpu: 0.0.40
codegen_flags: <defaults>
</compile_context>

<pallas_src>
import functools

import jax
import jax.numpy as jnp
from jax.experimental import pallas as pl
from jax.experimental.pallas import tpu as pltpu

EPS = 1e-5                          # nn.BatchNorm1d default eps
L_ALIGN = 16                        # pad L so bf16 sublane packing stays aligned
VMEM_LIMIT = 48 * 1024 * 1024       # explicit scoped-VMEM limit (fits v7x's 64 MiB)
MXU_DTYPE = jnp.bfloat16            # MXU operand dtype; accumulation stays f32


def _round_up(x, m):
    return (x + m - 1) // m * m


# ---------------------------------------------------------------------------
# in-kernel helpers
# ---------------------------------------------------------------------------
def _conv3(x, w_ref, lp, l_true):
    """k=3 / pad=1 conv (cross-correlation, no bias) on a flattened slab.

    x: (rows, Cin) = NB sequences of Lp rows each, channels-last, MXU dtype.
    w_ref: (3, Cin, Cout) VMEM ref; tap k pairs with x[l-1+k] (torch layout).
    Three tap matmuls accumulate in f32; the k=0/k=2 partials are shifted with
    pltpu.roll (XLU) and masked at per-sequence edges so zero padding is honored
    and rolls never leak across sequence (or block) boundaries.
    """
    t0 = jnp.dot(x, w_ref[0], preferred_element_type=jnp.float32)
    t1 = jnp.dot(x, w_ref[1], preferred_element_type=jnp.float32)
    t2 = jnp.dot(x, w_ref[2], preferred_element_type=jnp.float32)
    rows = x.shape[0]
    r = jax.lax.broadcasted_iota(jnp.int32, (rows, 1), 0) % lp      # row within seq
    left = jnp.where(r == 0, 0.0, pltpu.roll(t0, shift=1, axis=0))
    right = jnp.where(r == l_true - 1, 0.0, pltpu.roll(t2, shift=rows - 1, axis=0))
    return left + t1 + right


def _valid_row(nb, lp, l_true, n_real, blk):
    """(1, rows) f32 mask: 1.0 only for rows that are real (sequence, position)."""
    rows = nb * lp
    r = jax.lax.broadcasted_iota(jnp.int32, (1, rows), 1)
    in_seq = (r % lp) < l_true                       # drop length-padding rows
    in_batch = r < (n_real - blk * nb) * lp          # drop batch-padding sequences
    return jnp.logical_and(in_seq, in_batch).astype(jnp.float32)


def _col_stats(y, valid):
    """Per-channel [sum; sum-of-squares] over valid rows via MXU (1,rows)@(rows,C)."""
    s = jnp.dot(valid, y, preferred_element_type=jnp.float32)
    ss = jnp.dot(valid, y * y, preferred_element_type=jnp.float32)
    return jnp.concatenate([s, ss], axis=0)          # (2, C)


# ---------------------------------------------------------------------------
# kernels (NB sequences per grid step)
# ---------------------------------------------------------------------------
def _stats1_kernel(x_ref, w1_ref, s1_ref, *, nb, lp, l_true, n_real):
    @pl.when(pl.program_id(1) == 0)
    def _init():
        s1_ref[...] = jnp.zeros_like(s1_ref)

    x = x_ref[...].reshape(nb * lp, x_ref.shape[-1])
    y1 = _conv3(x, w1_ref, lp, l_true)
    blk = pl.program_id(0) * pl.num_programs(1) + pl.program_id(1)
    s1_ref[0] = s1_ref[0] + _col_stats(y1, _valid_row(nb, lp, l_true, n_real, blk))


def _stats2_kernel(x_ref, w1_ref, a1_ref, w2_ref, s2_ref, *, nb, lp, l_true, n_real):
    @pl.when(pl.program_id(1) == 0)
    def _init():
        s2_ref[...] = jnp.zeros_like(s2_ref)

    x = x_ref[...].reshape(nb * lp, x_ref.shape[-1])
    y1 = _conv3(x, w1_ref, lp, l_true)
    h = jnp.maximum(y1 * a1_ref[0:1, :] + a1_ref[1:2, :], 0.0)     # folded BN1 + ReLU
    y2 = _conv3(h.astype(MXU_DTYPE), w2_ref, lp, l_true)
    blk = pl.program_id(0) * pl.num_programs(1) + pl.program_id(1)
    s2_ref[0] = s2_ref[0] + _col_stats(y2, _valid_row(nb, lp, l_true, n_real, blk))


def _apply_kernel(x_ref, w1_ref, a1_ref, w2_ref, a2_ref, o_ref, *, nb, lp, l_true):
    x = x_ref[...].reshape(nb * lp, x_ref.shape[-1])
    y1 = _conv3(x, w1_ref, lp, l_true)
    h = jnp.maximum(y1 * a1_ref[0:1, :] + a1_ref[1:2, :], 0.0)     # folded BN1 + ReLU
    y2 = _conv3(h.astype(MXU_DTYPE), w2_ref, lp, l_true)
    o = jnp.maximum(y2 * a2_ref[0:1, :] + a2_ref[1:2, :], 0.0)     # folded BN2 + ReLU
    o_ref[...] = o.reshape(nb, lp, o.shape[-1]).astype(o_ref.dtype)


# ---------------------------------------------------------------------------
# wrapper
# ---------------------------------------------------------------------------
def double_conv(x_ncl, params, *, seqs_per_block=None):
    """x_ncl: (N, Cin, L) float32, same layout as the PyTorch module input.
    params: (w1, b1, g1, be1, w2, b2, g2, be2) with torch shapes.
    Conv biases cancel under training-mode BatchNorm, so they are unused."""
    w1, b1, g1, be1, w2, b2, g2, be2 = params
    del b1, b2                                   # cancel exactly in training-mode BN
    n, cin, l = x_ncl.shape
    cmid, cout = w1.shape[0], w2.shape[0]

    lp = _round_up(l, L_ALIGN)

    # --- sequences per grid step: enough MXU rows per step, bounded by VMEM ----
    if seqs_per_block is None:
        row_bytes = 4 * cin + 32 * cmid + 32 * cout        # rough live bytes / row
        nb_vmem = max(1, (12 * 1024 * 1024) // (lp * row_bytes))
        seqs_per_block = max(1, min(n, pl.cdiv(1024, lp), nb_vmem))
    nb = seqs_per_block

    n_blocks = pl.cdiv(n, nb)
    ncores = 2 if n_blocks >= 2 else 1           # split stats passes over v7x's 2 TCs
    steps = pl.cdiv(n_blocks, ncores)
    n_pad = ncores * steps * nb

    # --- layout plumbing: channels-last, real channel widths, bf16 operands ----
    x_nlc = jnp.transpose(x_ncl, (0, 2, 1)).astype(jnp.float32)
    x_pad = jnp.pad(x_nlc, ((0, n_pad - n), (0, lp - l), (0, 0))).astype(MXU_DTYPE)

    def pack_w(w):                               # torch (Cout, Cin, 3) -> (3, Cin, Cout)
        return jnp.transpose(w, (2, 1, 0)).astype(MXU_DTYPE)

    w1k, w2k = pack_w(w1), pack_w(w2)

    # --- specs ---
    x_spec2 = pl.BlockSpec((nb, lp, cin), lambda c, i: (c * steps + i, 0, 0))
    rep2 = lambda s: pl.BlockSpec(s, lambda c, i: (0,) * len(s))
    x_spec1 = pl.BlockSpec((nb, lp, cin), lambda i: (i, 0, 0))
    rep1 = lambda s: pl.BlockSpec(s, lambda i: (0,) * len(s))

    conv1_flops = 2 * n_pad * lp * cin * cmid * 3
    conv2_flops = 2 * n_pad * lp * cmid * cout * 3
    x_bytes = int(x_pad.size) * 2
    w_bytes = int(w1k.size + w2k.size) * 2

    stat_kw = dict(nb=nb, lp=lp, l_true=l, n_real=n)
    cp_stats = pltpu.CompilerParams(dimension_semantics=("parallel", "arbitrary"),
                                    vmem_limit_bytes=VMEM_LIMIT)

    # ---- pass 1: conv1 -> per-channel sum / sum-of-squares (BN1) ----
    stats1 = pl.pallas_call(
        functools.partial(_stats1_kernel, **stat_kw),
        grid=(ncores, steps),
        in_specs=[x_spec2, rep2((3, cin, cmid))],
        out_specs=pl.BlockSpec((1, 2, cmid), lambda c, i: (c, 0, 0)),
        out_shape=jax.ShapeDtypeStruct((ncores, 2, cmid), jnp.float32),
        compiler_params=cp_stats,
        cost_estimate=pl.CostEstimate(flops=conv1_flops, transcendentals=0,
                                      bytes_accessed=x_bytes + int(w1k.size) * 2),
    )(x_pad, w1k).sum(axis=0)

    count = n * l

    def fold_bn(stats, gamma, beta):
        # Training-mode BN folded to one FMA: scale = g * rsqrt(var + eps),
        # shift = beta - mean * scale.  (Conv bias drops out of both.)
        # E[y^2] - E[y]^2 in f32 is fine at these magnitudes; clamp for safety.
        mean = stats[0] / count
        var = jnp.maximum(stats[1] / count - mean * mean, 0.0)
        scale = gamma * jax.lax.rsqrt(var + EPS)
        shift = beta - mean * scale
        return jnp.stack([scale, shift], axis=0).astype(jnp.float32)     # (2, C)

    a1 = fold_bn(stats1, g1, be1)

    # ---- pass 2: conv1 -> BN1/ReLU -> conv2 -> BN2 stats (h stays block-local) ----
    stats2 = pl.pallas_call(
        functools.partial(_stats2_kernel, **stat_kw),
        grid=(ncores, steps),
        in_specs=[x_spec2, rep2((3, cin, cmid)), rep2((2, cmid)),
                  rep2((3, cmid, cout))],
        out_specs=pl.BlockSpec((1, 2, cout), lambda c, i: (c, 0, 0)),
        out_shape=jax.ShapeDtypeStruct((ncores, 2, cout), jnp.float32),
        compiler_params=cp_stats,
        cost_estimate=pl.CostEstimate(flops=conv1_flops + conv2_flops,
                                      transcendentals=0,
                                      bytes_accessed=x_bytes + w_bytes),
    )(x_pad, w1k, a1, w2k).sum(axis=0)

    a2 = fold_bn(stats2, g2, be2)

    # ---- pass 3: full chain with folded affines; output at real Cout ----
    out_pad = pl.pallas_call(
        functools.partial(_apply_kernel, nb=nb, lp=lp, l_true=l),
        grid=(ncores * steps,),
        in_specs=[x_spec1, rep1((3, cin, cmid)), rep1((2, cmid)),
                  rep1((3, cmid, cout)), rep1((2, cout))],
        out_specs=pl.BlockSpec((nb, lp, cout), lambda i: (i, 0, 0)),
        out_shape=jax.ShapeDtypeStruct((n_pad, lp, cout), jnp.float32),
        compiler_params=pltpu.CompilerParams(dimension_semantics=("parallel",),
                                             vmem_limit_bytes=VMEM_LIMIT),
        cost_estimate=pl.CostEstimate(flops=conv1_flops + conv2_flops,
                                      transcendentals=0,
                                      bytes_accessed=x_bytes + w_bytes
                                      + n_pad * lp * cout * 4),
    )(x_pad, w1k, a1, w2k, a2)

    return jnp.transpose(out_pad[:n, :l, :], (0, 2, 1))


# ---------------------------------------------------------------------------
# pure-JAX reference (torch semantics: cross-correlation conv + training-mode BN)
# ---------------------------------------------------------------------------
def reference(x_ncl, params):
    w1, b1, g1, be1, w2, b2, g2, be2 = params

    def conv(x, w, b):
        y = jax.lax.conv_general_dilated(
            x, w, window_strides=(1,), padding=((1, 1),),
            dimension_numbers=('NCH', 'OIH', 'NCH'))
        return y + b[None, :, None]

    def bn_relu(y, g, be):
        mean = jnp.mean(y, axis=(0, 2), keepdims=True)
        var = jnp.mean(jnp.square(y - mean), axis=(0, 2), keepdims=True)
        yn = (y - mean) / jnp.sqrt(var + EPS)
        return jnp.maximum(yn * g[None, :, None] + be[None, :, None], 0.0)

    h = bn_relu(conv(x_ncl, w1, b1), g1, be1)
    return bn_relu(conv(h, w2, b2), g2, be2)


if __name__ == "__main__":
    def make_case(n, cin, cmid, cout, l, key):
        ks = jax.random.split(key, 9)
        w1 = jax.random.normal(ks[0], (cmid, cin, 3), jnp.float32) * 0.2
        b1 = jax.random.normal(ks[1], (cmid,), jnp.float32) * 0.1
        w2 = jax.random.normal(ks[2], (cout, cmid, 3), jnp.float32) * 0.2
        b2 = jax.random.normal(ks[3], (cout,), jnp.float32) * 0.1
        g1 = 1.0 + 0.1 * jax.random.normal(ks[4], (cmid,), jnp.float32)
        be1 = 0.1 * jax.random.normal(ks[5], (cmid,), jnp.float32)
        g2 = 1.0 + 0.1 * jax.random.normal(ks[6], (cout,), jnp.float32)
        be2 = 0.1 * jax.random.normal(ks[7], (cout,), jnp.float32)
        x = jax.random.normal(ks[8], (n, cin, l), jnp.float32)
        return x, (w1, b1, g1, be1, w2, b2, g2, be2)

    # case 1: single-block path  (N=2, Cin=4, Cmid=8, Cout=8, L=16)
    x, params = make_case(2, 4, 8, 8, 16, jax.random.PRNGKey(0))
    out = jax.block_until_ready(double_conv(x, params))
    ref = reference(x, params)
    assert out.shape == (2, 8, 16), out.shape
    # bf16 MXU operands (f32 accumulation) -> looser tolerance vs the f32 reference.
    assert jnp.allclose(out, ref, atol=5e-2, rtol=5e-2), float(jnp.max(jnp.abs(out - ref)))

    # case 2: multi-block path (batch padding, length padding, both stats cores)
    x2, params2 = make_case(5, 4, 8, 8, 24, jax.random.PRNGKey(1))
    out2 = jax.block_until_ready(double_conv(x2, params2, seqs_per_block=2))
    ref2 = reference(x2, params2)
    assert out2.shape == (5, 8, 24), out2.shape
    assert jnp.allclose(out2, ref2, atol=5e-2, rtol=5e-2), float(jnp.max(jnp.abs(out2 - ref2)))

    print("KERNEL_OK")
</pallas_src>

<mosaic_0001>
module attributes {stable_mosaic.version = 11 : i64} {
  func.func @_stats1_kernel(%arg0: i32, %arg1: i32, %arg2: memref<2x16x4xbf16, #tpu.memory_space<vmem>>, %arg3: memref<3x4x8xbf16, #tpu.memory_space<vmem>>, %arg4: memref<1x2x8xf32, #tpu.memory_space<vmem>>) attributes {dimension_semantics = [#tpu.dimension_semantics<parallel>, #tpu.dimension_semantics<arbitrary>], iteration_bounds = array<i64: 1, 1>, scalar_prefetch = 0 : i64, scratch_operands = 0 : i64, tpu.core_type = #tpu.core_type<tc>, window_params = [{transform_indices = @transform_0, window_bounds = array<i64: 2, 16, 4>}, {pipeline_mode = #tpu.pipeline_mode<synchronous>, transform_indices = @transform_1, window_bounds = array<i64: 3, 4, 8>}, {transform_indices = @transform_2, window_bounds = array<i64: 1, 2, 8>}]} {
    %c0_i32 = arith.constant 0 : i32
    %0 = arith.cmpi eq, %arg1, %c0_i32 : i32
    %1 = arith.extui %0 : i1 to i32
    %c0_i32_0 = arith.constant 0 : i32
    %2 = arith.cmpi ne, %1, %c0_i32_0 : i32
    scf.if %2 {
      %cst_38 = arith.constant 0.000000e+00 : f32
      %86 = vector.broadcast %cst_38 : f32 to vector<1x2x8xf32>
      %c0_39 = arith.constant 0 : index
      %c0_40 = arith.constant 0 : index
      %c0_41 = arith.constant 0 : index
      %87 = vector.load %arg4[%c0_39, %c0_40, %c0_41] : memref<1x2x8xf32, #tpu.memory_space<vmem>>, vector<1x2x8xf32>
      tpu.vector_store %arg4[%c0_39, %c0_40, %c0_41], %86 {strides = array<i32>} : memref<1x2x8xf32, #tpu.memory_space<vmem>>, vector<1x2x8xf32>,
    } else {
    }
    %c0 = arith.constant 0 : index
    %c0_1 = arith.constant 0 : index
    %c0_2 = arith.constant 0 : index
    %3 = vector.load %arg2[%c0, %c0_1, %c0_2] : memref<2x16x4xbf16, #tpu.memory_space<vmem>>, vector<2x16x4xbf16>
    %4 = vector.shape_cast %3 : vector<2x16x4xbf16> to vector<32x4xbf16>
    %c0_3 = arith.constant 0 : index
    %c0_4 = arith.constant 0 : index
    %c0_5 = arith.constant 0 : index
    %5 = vector.load %arg3[%c0_3, %c0_4, %c0_5] : memref<3x4x8xbf16, #tpu.memory_space<vmem>>, vector<1x4x8xbf16>
    %6 = vector.shape_cast %5 : vector<1x4x8xbf16> to vector<4x8xbf16>
    %cst = arith.constant dense<0.000000e+00> : vector<32x8xf32>
    %7 = tpu.matmul %4, %6, %cst {dimension_numbers = #tpu.dot_dimension_numbers<[1], [0], [0], [1], [0, 0, 1, 1], [], []>} : vector<32x4xbf16>, vector<4x8xbf16>, vector<32x8xf32> -> vector<32x8xf32>
    %c1 = arith.constant 1 : index
    %c0_6 = arith.constant 0 : index
    %c0_7 = arith.constant 0 : index
    %8 = vector.load %arg3[%c1, %c0_6, %c0_7] : memref<3x4x8xbf16, #tpu.memory_space<vmem>>, vector<1x4x8xbf16>
    %9 = vector.shape_cast %8 : vector<1x4x8xbf16> to vector<4x8xbf16>
    %cst_8 = arith.constant dense<0.000000e+00> : vector<32x8xf32>
    %10 = tpu.matmul %4, %9, %cst_8 {dimension_numbers = #tpu.dot_dimension_numbers<[1], [0], [0], [1], [0, 0, 1, 1], [], []>} : vector<32x4xbf16>, vector<4x8xbf16>, vector<32x8xf32> -> vector<32x8xf32>
    %c2 = arith.constant 2 : index
    %c0_9 = arith.constant 0 : index
    %c0_10 = arith.constant 0 : index
    %11 = vector.load %arg3[%c2, %c0_9, %c0_10] : memref<3x4x8xbf16, #tpu.memory_space<vmem>>, vector<1x4x8xbf16>
    %12 = vector.shape_cast %11 : vector<1x4x8xbf16> to vector<4x8xbf16>
    %cst_11 = arith.constant dense<0.000000e+00> : vector<32x8xf32>
    %13 = tpu.matmul %4, %12, %cst_11 {dimension_numbers = #tpu.dot_dimension_numbers<[1], [0], [0], [1], [0, 0, 1, 1], [], []>} : vector<32x4xbf16>, vector<4x8xbf16>, vector<32x8xf32> -> vector<32x8xf32>
    %14 = tpu.iota {dimensions = array<i32: 0>} : vector<32x1xi32>
    %c16_i32 = arith.constant 16 : i32
    %c0_i32_12 = arith.constant 0 : i32
    %15 = arith.cmpi eq, %c16_i32, %c0_i32_12 : i32
    %c1_i32 = arith.constant 1 : i32
    %16 = arith.select %15, %c1_i32, %c16_i32 : i32
    %17 = vector.broadcast %16 : i32 to vector<32x1xi32>
    %18 = arith.remsi %14, %17 : vector<32x1xi32>
    %c0_i32_13 = arith.constant 0 : i32
    %19 = vector.broadcast %c0_i32_13 : i32 to vector<32x1xi32>
    %20 = arith.cmpi ne, %18, %19 : vector<32x1xi32>
    %c0_i32_14 = arith.constant 0 : i32
    %21 = vector.broadcast %c0_i32_14 : i32 to vector<32x1xi32>
    %22 = arith.cmpi slt, %18, %21 : vector<32x1xi32>
    %c0_i32_15 = arith.constant 0 : i32
    %23 = arith.cmpi slt, %16, %c0_i32_15 : i32
    %24 = vector.broadcast %23 : i1 to vector<32x1xi1>
    %25 = vector.broadcast %24 : vector<32x1xi1> to vector<32x1xi1>
    %26 = arith.xori %22, %25 : vector<32x1xi1>
    %27 = arith.andi %26, %20 : vector<32x1xi1>
    %28 = vector.broadcast %16 : i32 to vector<32x1xi32>
    %29 = arith.addi %18, %28 : vector<32x1xi32>
    %30 = arith.select %27, %29, %18 : vector<32x1xi1>, vector<32x1xi32>
    %c0_i32_16 = arith.constant 0 : i32
    %31 = vector.broadcast %c0_i32_16 : i32 to vector<32x1xi32>
    %32 = arith.cmpi eq, %30, %31 : vector<32x1xi32>
    %c1_i32_17 = arith.constant 1 : i32
    %33 = tpu.dynamic_rotate %7 by %c1_i32_17 dim 0 : vector<32x8xf32>, i32 -> vector<32x8xf32>
    %cst_18 = arith.constant 0.000000e+00 : f32
    %34 = vector.shape_cast %32 : vector<32x1xi1> to vector<32x1xi1>
    %35 = vector.broadcast %34 : vector<32x1xi1> to vector<32x8xi1>
    %36 = vector.broadcast %cst_18 : f32 to vector<32x8xf32>
    %37 = arith.select %35, %36, %33 : vector<32x8xi1>, vector<32x8xf32>
    %c15_i32 = arith.constant 15 : i32
    %38 = vector.broadcast %c15_i32 : i32 to vector<32x1xi32>
    %39 = arith.cmpi eq, %30, %38 : vector<32x1xi32>
    %c31_i32 = arith.constant 31 : i32
    %40 = tpu.dynamic_rotate %13 by %c31_i32 dim 0 : vector<32x8xf32>, i32 -> vector<32x8xf32>
    %cst_19 = arith.constant 0.000000e+00 : f32
    %41 = vector.shape_cast %39 : vector<32x1xi1> to vector<32x1xi1>
    %42 = vector.broadcast %41 : vector<32x1xi1> to vector<32x8xi1>
    %43 = vector.broadcast %cst_19 : f32 to vector<32x8xf32>
    %44 = arith.select %42, %43, %40 : vector<32x8xi1>, vector<32x8xf32>
    %45 = arith.addf %37, %10 : vector<32x8xf32>
    %46 = arith.addf %45, %44 : vector<32x8xf32>
    %c1_i32_20 = arith.constant 1 : i32
    %47 = arith.muli %arg0, %c1_i32_20 : i32
    %48 = arith.addi %47, %arg1 : i32
    %c0_21 = arith.constant 0 : index
    %c0_22 = arith.constant 0 : index
    %c0_23 = arith.constant 0 : index
    %49 = vector.load %arg4[%c0_21, %c0_22, %c0_23] : memref<1x2x8xf32, #tpu.memory_space<vmem>>, vector<1x2x8xf32>
    %50 = vector.shape_cast %49 : vector<1x2x8xf32> to vector<2x8xf32>
    %51 = tpu.iota {dimensions = array<i32: 1>} : vector<1x32xi32>
    %c16_i32_24 = arith.constant 16 : i32
    %c0_i32_25 = arith.constant 0 : i32
    %52 = arith.cmpi eq, %c16_i32_24, %c0_i32_25 : i32
    %c1_i32_26 = arith.constant 1 : i32
    %53 = arith.select %52, %c1_i32_26, %c16_i32_24 : i32
    %54 = vector.broadcast %53 : i32 to vector<1x32xi32>
    %55 = arith.remsi %51, %54 : vector<1x32xi32>
    %c0_i32_27 = arith.constant 0 : i32
    %56 = vector.broadcast %c0_i32_27 : i32 to vector<1x32xi32>
    %57 = arith.cmpi ne, %55, %56 : vector<1x32xi32>
    %c0_i32_28 = arith.constant 0 : i32
    %58 = vector.broadcast %c0_i32_28 : i32 to vector<1x32xi32>
    %59 = arith.cmpi slt, %55, %58 : vector<1x32xi32>
    %c0_i32_29 = arith.constant 0 : i32
    %60 = arith.cmpi slt, %53, %c0_i32_29 : i32
    %61 = vector.broadcast %60 : i1 to vector<1x32xi1>
    %62 = vector.broadcast %61 : vector<1x32xi1> to vector<1x32xi1>
    %63 = arith.xori %59, %62 : vector<1x32xi1>
    %64 = arith.andi %63, %57 : vector<1x32xi1>
    %65 = vector.broadcast %53 : i32 to vector<1x32xi32>
    %66 = arith.addi %55, %65 : vector<1x32xi32>
    %67 = arith.select %64, %66, %55 : vector<1x32xi1>, vector<1x32xi32>
    %c16_i32_30 = arith.constant 16 : i32
    %68 = vector.broadcast %c16_i32_30 : i32 to vector<1x32xi32>
    %69 = arith.cmpi slt, %67, %68 : vector<1x32xi32>
    %c2_i32 = arith.constant 2 : i32
    %70 = arith.muli %48, %c2_i32 : i32
    %c2_i32_31 = arith.constant 2 : i32
    %71 = arith.subi %c2_i32_31, %70 : i32
    %c16_i32_32 = arith.constant 16 : i32
    %72 = arith.muli %71, %c16_i32_32 : i32
    %73 = vector.broadcast %72 : i32 to vector<1x32xi32>
    %74 = arith.cmpi slt, %51, %73 : vector<1x32xi32>
    %75 = arith.andi %69, %74 : vector<1x32xi1>
    %76 = arith.extui %75 : vector<1x32xi1> to vector<1x32xi32>
    %77 = arith.sitofp %76 : vector<1x32xi32> to vector<1x32xf32>
    %cst_33 = arith.constant dense<0.000000e+00> : vector<1x8xf32>
    %78 = tpu.matmul %77, %46, %cst_33 {dimension_numbers = #tpu.dot_dimension_numbers<[1], [0], [0], [1], [0, 0, 1, 1], [], []>} : vector<1x32xf32>, vector<32x8xf32>, vector<1x8xf32> -> vector<1x8xf32>
    %79 = arith.mulf %46, %46 : vector<32x8xf32>
    %cst_34 = arith.constant dense<0.000000e+00> : vector<1x8xf32>
    %80 = tpu.matmul %77, %79, %cst_34 {dimension_numbers = #tpu.dot_dimension_numbers<[1], [0], [0], [1], [0, 0, 1, 1], [], []>} : vector<1x32xf32>, vector<32x8xf32>, vector<1x8xf32> -> vector<1x8xf32>
    %81 = tpu.concatenate %78, %80 in 0 : vector<1x8xf32>, vector<1x8xf32> -> vector<2x8xf32>
    %82 = arith.addf %50, %81 : vector<2x8xf32>
    %c0_35 = arith.constant 0 : index
    %c0_36 = arith.constant 0 : index
    %c0_37 = arith.constant 0 : index
    %83 = vector.load %arg4[%c0_35, %c0_36, %c0_37] : memref<1x2x8xf32, #tpu.memory_space<vmem>>, vector<1x2x8xf32>
    %84 = vector.shape_cast %83 : vector<1x2x8xf32> to vector<2x8xf32>
    %85 = vector.shape_cast %82 : vector<2x8xf32> to vector<1x2x8xf32>
    tpu.vector_store %arg4[%c0_35, %c0_36, %c0_37], %85 {strides = array<i32>} : memref<1x2x8xf32, #tpu.memory_space<vmem>>, vector<1x2x8xf32>,
    return
  }
  func.func @transform_0(%arg0: i32, %arg1: i32) -> (i32, i32, i32) {
    %c1_i32 = arith.constant 1 : i32
    %0 = arith.muli %arg0, %c1_i32 : i32
    %1 = arith.addi %0, %arg1 : i32
    %c0_i32 = arith.constant 0 : i32
    %c0_i32_0 = arith.constant 0 : i32
    %c0_i32_1 = arith.constant 0 : i32
    return %1, %c0_i32, %c0_i32_0 : i32, i32, i32
  }
  func.func @transform_1(%arg0: i32, %arg1: i32) -> (i32, i32, i32) {
    %c0_i32 = arith.constant 0 : i32
    %c0_i32_0 = arith.constant 0 : i32
    %c0_i32_1 = arith.constant 0 : i32
    %c0_i32_2 = arith.constant 0 : i32
    return %c0_i32, %c0_i32_0, %c0_i32_1 : i32, i32, i32
  }
  func.func @transform_2(%arg0: i32, %arg1: i32) -> (i32, i32, i32) {
    %c0_i32 = arith.constant 0 : i32
    %c0_i32_0 = arith.constant 0 : i32
    %c0_i32_1 = arith.constant 0 : i32
    return %arg0, %c0_i32, %c0_i32_0 : i32, i32, i32
  }
}

</mosaic_0001>

<llo_original>
// kernel: tpu_custom_call.1
$region0: #{tpu_custom_call.1}
  #allocation0 [shape = 'u32[]', space=smem, size = 0x4, offset = 0x4, fixed_abs, tag = 'smem constant byte address 0x4 - core index']
  #allocation1 [shape = 'u32[144,128]{1,0:T(1,128)}', space=vmem, size = 0x12000, scoped, tag = 'internal scratch']
  %s0 = inlined_call_operand.vmem [shape: bf16[2,16,4], index: 0, kind: input, shape index: {}]
  %s1 = inlined_call_operand.vmem [shape: bf16[3,4,8], index: 1, kind: input, shape index: {}]
  %s2 = inlined_call_operand.hbm [shape: f32[1,2,8], index: 2, kind: output, shape index: {}]
  %s3 = sld [smem:[#allocation0]]
  $region22: #{tpu_custom_call.1} parent=0
    _
  %s5 = ssub.s32 1, %s3
  %s6 = scalar_select 0, %s5, %s3
  $region1: #{tpu_custom_call.1} parent=0
    #allocation2 [shape = 'u8[1024]{0}', space=vmem, size = 0x400, scoped, tag = 'output window, operand 0, single buffered']
    #allocation3 [shape = 's32[1]{0}', space=sflag, size = 0x4, scoped, tag = 'scoped memory for tpu_custom_call.1']
    %7 = vsyncpa [#allocation3], 0
    // Predicated region
    $region2: #{tpu_custom_call.1} parent=1 // pred_check
      _
    $region3: #{tpu_custom_call.1} parent=1 // pred_check_branch
      %9 = sbr.rel (0) target = $region5
    $region4: #{tpu_custom_call.1} parent=1 // pred_region
      %s10 = sadd.s32 0, 0
      %s11 = smul.u32 2, %s10
      %p12 = scmp.lt.s32.totalorder %s11, 1
      %s13 = scalar_select %p12, %s11, 1
      %s14 = smul.addr %s13, 2
      %s15 = smul.addr %s14, 4
      %s16 = scalar_lea.vmem %s0, %s15
      %s17 = sadd.s32 0, 0
      %s18 = smul.u32 2, %s17
    $region5: #{tpu_custom_call.1} parent=1 // pred_fallthru
      _
    // Predicated region
    $region6: #{tpu_custom_call.1} parent=1 // pred_check
      _
    $region7: #{tpu_custom_call.1} parent=1 // pred_check_branch
      %20 = sbr.rel (0) target = $region9
    $region8: #{tpu_custom_call.1} parent=1 // pred_region
      _
    $region9: #{tpu_custom_call.1} parent=1 // pred_fallthru
      _
    %s21 = sadd.s32 0, 0
    %s22 = smul.u32 2, %s21
    %p23 = scmp.lt.s32.totalorder %s22, 1
    %s24 = scalar_select %p23, %s22, 1
    %s25 = smul.addr %s24, 2
    %s26 = smul.addr %s25, 4
    %s27 = scalar_lea.vmem %s0, %s26
    %s28 = sadd.s32 0, 0
    %s29 = smul.u32 2, %s28
    %p30 = scmp.lt.s32.totalorder %s29, 1
    %s31 = scalar_select %p30, %s29, 1
    %s32 = smul.addr %s31, 2
    %s33 = smul.addr %s32, 4
    %s34 = scalar_lea.vmem %s0, %s33
    %s35 = sadd.s32 0, 0
    %s36 = smul.u32 2, %s35
    %p38 = scmp.eq.s32.totalorder 0, 0
    // Predicated region
    $region10: #{tpu_custom_call.1} parent=1 // pred_check
      %p39 = pneg %p38
    $region11: #{tpu_custom_call.1} parent=1 // pred_check_branch
      %41 = sbr.rel (%p39) target = $region13
    $region12: #{tpu_custom_call.1} parent=1 // pred_region
      %vm42 = vcmask 58368
      %43 = vst.msk [vmem:[#allocation2] sm:$0x3] %vm42, 0.0
    $region13: #{tpu_custom_call.1} parent=1 // pred_fallthru
      _
    %v44 = vld [vmem:[%s34] sm:$0xf]
    %v45 = vld [vmem:[%s34 + $0x4] sm:$0xf]
    %v46 = vld [vmem:[%s34 + $0x8] sm:$0xf]
    %v47 = vld [vmem:[%s34 + $0xc] sm:$0xf]
    %v48 = vld [vmem:[%s1] sm:$0x3]
    %v53 = vunpack.c.l.b16 %v44
    %v54 = vunpack.c.l.b16 %v45
    %v55 = vunpack.c.l.b16 %v46
    %v56 = vunpack.c.l.b16 %v47
    %v57 = vpack.c.b16 %v54, %v53
    %v58 = vpack.c.b16 %v56, %v55
    %vm59 = vcmask 31744
    %v61 = vsel %vm59, %v57, 0
    %v64 = vsel %vm59, %v58, 0
    %vm66 = vcmask 1041408
    %v68 = vsel %vm66, %v48, 0
    %70 = vmatprep.subr.bf16.mxu0 0
    %71 = vmatpush1.bf16.msra.mxu0 %v68
    %72 = vmatprep.subr.bf16.mxu0 0
    %73 = vmatpush1.bf16.msra.mxu0 0
    %74 = vmatprep.subr.bf16.mxu0 0
    %75 = vmatpush1.bf16.msra.mxu0 0
    %76 = vmatprep.subr.bf16.mxu0 0
    %77 = vmatpush1.bf16.msra.mxu0 0
    %78 = vmatprep.subr.bf16.mxu0 0
    %79 = vmatpush1.bf16.msra.mxu0 0
    %80 = vmatprep.subr.bf16.mxu0 0
    %81 = vmatpush1.bf16.msra.mxu0 0
    %82 = vmatprep.subr.bf16.mxu0 0
    %83 = vmatpush1.bf16.msra.mxu0 0
    %84 = vmatprep.subr.bf16.mxu0 0
    %85 = vmatpush1.bf16.msra.mxu0 0
    %86 = vmatprep.subr.bf16.mxu0 0
    %87 = vmatpush1.bf16.msra.mxu0 0
    %88 = vmatprep.subr.bf16.mxu0 0
    %89 = vmatpush1.bf16.msra.mxu0 0
    %90 = vmatprep.subr.bf16.mxu0 0
    %91 = vmatpush1.bf16.msra.mxu0 0
    %92 = vmatprep.subr.bf16.mxu0 0
    %93 = vmatpush1.bf16.msra.mxu0 0
    %94 = vmatprep.subr.bf16.mxu0 0
    %95 = vmatpush1.bf16.msra.mxu0 0
    %96 = vmatprep.subr.bf16.mxu0 0
    %97 = vmatpush1.bf16.msra.mxu0 0
    %98 = vmatprep.subr.bf16.mxu0 0
    %99 = vmatpush1.bf16.msra.mxu0 0
    %100 = vmatprep.subr.bf16.mxu0 0
    %101 = vmatpush1.bf16.msra.mxu0 0
    %102 = vmatprep.mubr.bf16.mxu0 0
    %103 = vmatmul.mubr.bf16.gmra.mrb[0].mxu0 %v61
    %v104 = vpop.f32.mrb[0].mxu0
    %v105 = vadd.f32 0.0, %v104
    %v106 = vpop.f32.mrb[0].mxu0
    %v107 = vpop.f32.mrb[0].mxu0
    %v108 = vadd.f32 0.0, %v107
    %v109 = vpop.f32.mrb[0].mxu0
    %110 = vmatprep.mubr.bf16.mxu0 0
    %111 = vmatmul.mubr.bf16.gmra.mrb[0].mxu0 %v64
    %v112 = vpop.f32.mrb[0].mxu0
    %v113 = vadd.f32 0.0, %v112
    %v114 = vpop.f32.mrb[0].mxu0
    %v115 = vpop.f32.mrb[0].mxu0
    %v116 = vadd.f32 0.0, %v115
    %v117 = vpop.f32.mrb[0].mxu0
    %118 = vdwg.mxu0
    %s119 = scalar_lea.vmem %s1, 2
    %v120 = vld [vmem:[%s119] sm:$0x3]
    %v122 = vsel %vm66, %v120, 0
    %124 = vmatprep.subr.bf16.mxu0 0
    %125 = vmatpush1.bf16.msra.mxu0 %v122
    %126 = vmatprep.subr.bf16.mxu0 0
    %127 = vmatpush1.bf16.msra.mxu0 0
    %128 = vmatprep.subr.bf16.mxu0 0
    %129 = vmatpush1.bf16.msra.mxu0 0
    %130 = vmatprep.subr.bf16.mxu0 0
    %131 = vmatpush1.bf16.msra.mxu0 0
    %132 = vmatprep.subr.bf16.mxu0 0
    %133 = vmatpush1.bf16.msra.mxu0 0
    %134 = vmatprep.subr.bf16.mxu0 0
    %135 = vmatpush1.bf16.msra.mxu0 0
    %136 = vmatprep.subr.bf16.mxu0 0
    %137 = vmatpush1.bf16.msra.mxu0 0
    %138 = vmatprep.subr.bf16.mxu0 0
    %139 = vmatpush1.bf16.msra.mxu0 0
    %140 = vmatprep.subr.bf16.mxu0 0
    %141 = vmatpush1.bf16.msra.mxu0 0
    %142 = vmatprep.subr.bf16.mxu0 0
    %143 = vmatpush1.bf16.msra.mxu0 0
    %144 = vmatprep.subr.bf16.mxu0 0
    %145 = vmatpush1.bf16.msra.mxu0 0
    %146 = vmatprep.subr.bf16.mxu0 0
    %147 = vmatpush1.bf16.msra.mxu0 0
    %148 = vmatprep.subr.bf16.mxu0 0
    %149 = vmatpush1.bf16.msra.mxu0 0
    %150 = vmatprep.subr.bf16.mxu0 0
    %151 = vmatpush1.bf16.msra.mxu0 0
    %152 = vmatprep.subr.bf16.mxu0 0
    %153 = vmatpush1.bf16.msra.mxu0 0
    %154 = vmatprep.subr.bf16.mxu0 0
    %155 = vmatpush1.bf16.msra.mxu0 0
    %156 = vmatprep.mubr.bf16.mxu0 0
    %157 = vmatmul.mubr.bf16.gmra.mrb[0].mxu0 %v61
    %v158 = vpop.f32.mrb[0].mxu0
    %v159 = vadd.f32 0.0, %v158
    %v160 = vpop.f32.mrb[0].mxu0
    %v161 = vpop.f32.mrb[0].mxu0
    %v162 = vadd.f32 0.0, %v161
    %v163 = vpop.f32.mrb[0].mxu0
    %164 = vmatprep.mubr.bf16.mxu0 0
    %165 = vmatmul.mubr.bf16.gmra.mrb[0].mxu0 %v64
    %v166 = vpop.f32.mrb[0].mxu0
    %v167 = vadd.f32 0.0, %v166
    %v168 = vpop.f32.mrb[0].mxu0
    %v169 = vpop.f32.mrb[0].mxu0
    %v170 = vadd.f32 0.0, %v169
    %v171 = vpop.f32.mrb[0].mxu0
    %172 = vdwg.mxu0
    %s173 = scalar_lea.vmem %s1, 4
    %v174 = vld [vmem:[%s173] sm:$0x3]
    %v176 = vsel %vm66, %v174, 0
    %178 = vmatprep.subr.bf16.mxu0 0
    %179 = vmatpush1.bf16.msra.mxu0 %v176
    %180 = vmatprep.subr.bf16.mxu0 0
    %181 = vmatpush1.bf16.msra.mxu0 0
    %182 = vmatprep.subr.bf16.mxu0 0
    %183 = vmatpush1.bf16.msra.mxu0 0
    %184 = vmatprep.subr.bf16.mxu0 0
    %185 = vmatpush1.bf16.msra.mxu0 0
    %186 = vmatprep.subr.bf16.mxu0 0
    %187 = vmatpush1.bf16.msra.mxu0 0
    %188 = vmatprep.subr.bf16.mxu0 0
    %189 = vmatpush1.bf16.msra.mxu0 0
    %190 = vmatprep.subr.bf16.mxu0 0
    %191 = vmatpush1.bf16.msra.mxu0 0
    %192 = vmatprep.subr.bf16.mxu0 0
    %193 = vmatpush1.bf16.msra.mxu0 0
    %194 = vmatprep.subr.bf16.mxu0 0
    %195 = vmatpush1.bf16.msra.mxu0 0
    %196 = vmatprep.subr.bf16.mxu0 0
    %197 = vmatpush1.bf16.msra.mxu0 0
    %198 = vmatprep.subr.bf16.mxu0 0
    %199 = vmatpush1.bf16.msra.mxu0 0
    %200 = vmatprep.subr.bf16.mxu0 0
    %201 = vmatpush1.bf16.msra.mxu0 0
    %202 = vmatprep.subr.bf16.mxu0 0
    %203 = vmatpush1.bf16.msra.mxu0 0
    %204 = vmatprep.subr.bf16.mxu0 0
    %205 = vmatpush1.bf16.msra.mxu0 0
    %206 = vmatprep.subr.bf16.mxu0 0
    %207 = vmatpush1.bf16.msra.mxu0 0
    %208 = vmatprep.subr.bf16.mxu0 0
    %209 = vmatpush1.bf16.msra.mxu0 0
    %210 = vmatprep.mubr.bf16.mxu0 0
    %211 = vmatmul.mubr.bf16.gmra.mrb[0].mxu0 %v61
    %v212 = vpop.f32.mrb[0].mxu0
    %v213 = vadd.f32 0.0, %v212
    %v214 = vpop.f32.mrb[0].mxu0
    %v215 = vpop.f32.mrb[0].mxu0
    %v216 = vadd.f32 0.0, %v215
    %v217 = vpop.f32.mrb[0].mxu0
    %218 = vmatprep.mubr.bf16.mxu0 0
    %219 = vmatmul.mubr.bf16.gmra.mrb[0].mxu0 %v64
    %v220 = vpop.f32.mrb[0].mxu0
    %v221 = vadd.f32 0.0, %v220
    %v222 = vpop.f32.mrb[0].mxu0
    %v223 = vpop.f32.mrb[0].mxu0
    %v224 = vadd.f32 0.0, %v223
    %v225 = vpop.f32.mrb[0].mxu0
    %226 = vdwg.mxu0
    %v227 = vlaneseq
    %v228 = vshrl.u32 %v227, 7
    %v229 = vadd.s32 %v228, 8
    %v230 = vadd.s32 %v228, 16
    %v231 = vadd.s32 %v228, 24
    %vm232 = vcmp.lt.s32.totalorder %v228, 0
    %v233 = vsub.s32 0, %v228
    %v234 = vsel %vm232, %v233, %v228
    %v235 = vshrl.u32 %v234, 4
    %v236 = vand.u32 %v234, 15
    %v237 = vsub.s32 0, %v236
    %v238 = vsel %vm232, %v237, %v236
    %vm239 = vcmp.lt.s32.totalorder %v229, 0
    %v240 = vsub.s32 0, %v229
    %v241 = vsel %vm239, %v240, %v229
    %v242 = vshrl.u32 %v241, 4
    %v243 = vand.u32 %v241, 15
    %v244 = vsub.s32 0, %v243
    %v245 = vsel %vm239, %v244, %v243
    %vm246 = vcmp.lt.s32.totalorder %v230, 0
    %v247 = vsub.s32 0, %v230
    %v248 = vsel %vm246, %v247, %v230
    %v249 = vshrl.u32 %v248, 4
    %v250 = vand.u32 %v248, 15
    %v251 = vsub.s32 0, %v250
    %v252 = vsel %vm246, %v251, %v250
    %vm253 = vcmp.lt.s32.totalorder %v231, 0
    %v254 = vsub.s32 0, %v231
    %v255 = vsel %vm253, %v254, %v231
    %v256 = vshrl.u32 %v255, 4
    %v257 = vand.u32 %v255, 15
    %v258 = vsub.s32 0, %v257
    %v259 = vsel %vm253, %v258, %v257
    %vm260 = vcmp.ne.s32.totalorder %v238, 0
    %vm261 = vcmp.ne.s32.totalorder %v245, 0
    %vm262 = vcmp.ne.s32.totalorder %v252, 0
    %vm263 = vcmp.ne.s32.totalorder %v259, 0
    %vm264 = vcmp.lt.s32.totalorder %v238, 0
    %vm265 = vcmp.lt.s32.totalorder %v245, 0
    %vm266 = vcmp.lt.s32.totalorder %v252, 0
    %vm267 = vcmp.lt.s32.totalorder %v259, 0
    %vm268 = vmand %vm264, %vm260
    %vm269 = vmand %vm265, %vm261
    %vm270 = vmand %vm266, %vm262
    %vm271 = vmand %vm267, %vm263
    %v272 = vadd.s32 %v238, 16
    %v273 = vadd.s32 %v245, 16
    %v274 = vadd.s32 %v252, 16
    %v275 = vadd.s32 %v259, 16
    %v276 = vsel %vm268, %v272, %v238
    %v277 = vsel %vm269, %v273, %v245
    %v278 = vsel %vm270, %v274, %v252
    %v279 = vsel %vm271, %v275, %v259
    %vm280 = vcmp.eq.s32.totalorder %v276, 0
    %vm281 = vcmp.eq.s32.totalorder %v277, 0
    %vm282 = vcmp.eq.s32.totalorder %v278, 0
    %vm283 = vcmp.eq.s32.totalorder %v279, 0
    %v284 = vrot.slane %v105, 7
    %v285 = vrot.slane %v108, 7
    %v286 = vrot.slane %v113, 7
    %v287 = vrot.slane %v116, 7
    %vm288 = vcmp.lt.s32.totalorder %v228, 1
    %v289 = vsel %vm288, %v286, %v287
    %v290 = vsel %vm288, %v285, %v286
    %v291 = vsel %vm288, %v284, %v285
    %v292 = vsel %vm288, %v287, %v284
    %v293 = vsel %vm280, 1, 0
    %v294 = vsel %vm281, 1, 0
    %v295 = vsel %vm282, 1, 0
    %v296 = vsel %vm283, 1, 0
    %vm297 = vcmp.eq.s32.totalorder %v293, 1
    %vm298 = vcmp.eq.s32.totalorder %v294, 1
    %vm299 = vcmp.eq.s32.totalorder %v295, 1
    %vm300 = vcmp.eq.s32.totalorder %v296, 1
    %v301 = vsel %vm297, 0.0, %v292
    %v302 = vsel %vm298, 0.0, %v291
    %v303 = vsel %vm299, 0.0, %v290
    %v304 = vsel %vm300, 0.0, %v289
    %vm305 = vcmp.eq.s32.totalorder %v276, 15
    %vm306 = vcmp.eq.s32.totalorder %v277, 15
    %vm307 = vcmp.eq.s32.totalorder %v278, 15
    %vm308 = vcmp.eq.s32.totalorder %v279, 15
    %v309 = vrot.slane %v213, 1
    %v310 = vrot.slane %v216, 1
    %v311 = vrot.slane %v221, 1
    %v312 = vrot.slane %v224, 1
    %vm313 = vcmp.lt.s32.totalorder %v228, 7
    %v314 = vsel %vm313, %v311, %v312
    %v315 = vsel %vm313, %v310, %v311
    %v316 = vsel %vm313, %v309, %v310
    %v317 = vsel %vm313, %v312, %v309
    %v318 = vsel %vm305, 1, 0
    %v319 = vsel %vm306, 1, 0
    %v320 = vsel %vm307, 1, 0
    %v321 = vsel %vm308, 1, 0
    %vm322 = vcmp.eq.s32.totalorder %v318, 1
    %vm323 = vcmp.eq.s32.totalorder %v319, 1
    %vm324 = vcmp.eq.s32.totalorder %v320, 1
    %vm325 = vcmp.eq.s32.totalorder %v321, 1
    %v326 = vsel %vm322, 0.0, %v316
    %v327 = vsel %vm323, 0.0, %v315
    %v328 = vsel %vm324, 0.0, %v314
    %v329 = vsel %vm325, 0.0, %v317
    %v330 = vadd.f32 %v301, %v159
    %v331 = vadd.f32 %v302, %v162
    %v332 = vadd.f32 %v303, %v167
    %v333 = vadd.f32 %v304, %v170
    %v334 = vadd.f32 %v330, %v326
    %v335 = vadd.f32 %v331, %v327
    %v336 = vadd.f32 %v332, %v328
    %v337 = vadd.f32 %v333, %v329
    %s338 = sadd.s32 0, 0
    %v339 = vld [vmem:[#allocation2] sm:$0x3]
    %v340 = vlaneseq
    %v341 = vand.u32 %v340, 127
    %vm342 = vcmp.lt.s32.totalorder %v341, 0
    %v343 = vsub.s32 0, %v341
    %v344 = vsel %vm342, %v343, %v341
    %v345 = vshrl.u32 %v344, 4
    %v346 = vand.u32 %v344, 15
    %v347 = vsub.s32 0, %v346
    %v348 = vsel %vm342, %v347, %v346
    %vm349 = vcmp.ne.s32.totalorder %v348, 0
    %vm350 = vcmp.lt.s32.totalorder %v348, 0
    %vm351 = vmand %vm350, %vm349
    %v352 = vadd.s32 %v348, 16
    %v353 = vsel %vm351, %v352, %v348
    %vm354 = vcmp.lt.s32.totalorder %v353, 16
    %s355 = smul.u32 %s338, 2
    %s356 = ssub.s32 2, %s355
    %s357 = smul.u32 %s356, 16
    %v358 = vstv %s357
    %vm359 = vcmp.lt.s32.totalorder %v341, %v358
    %vm360 = vmand %vm354, %vm359
    %v361 = vsel %vm360, 1, 0
    %v362 = vcvt.s32.f32 %v361
    %vm363 = vcmask 261120
    %v365 = vsel %vm363, %v362, 0
    %367 = vmatprep.subr.mxu0 0.0
    %368 = vmatpush1.msra.mxu0 %v334
    %369 = vmatprep.subr.mxu0 0.0
    %370 = vmatpush1.msra.mxu0 %v335
    %371 = vmatprep.subr.mxu0 0.0
    %372 = vmatpush1.msra.mxu0 %v336
    %373 = vmatprep.subr.mxu0 0.0
    %374 = vmatpush1.msra.mxu0 %v337
    %375 = vmatprep.subr.mxu0 0.0
    %376 = vmatpush1.msra.mxu0 0.0
    %377 = vmatprep.subr.mxu0 0.0
    %378 = vmatpush1.msra.mxu0 0.0
    %379 = vmatprep.subr.mxu0 0.0
    %380 = vmatpush1.msra.mxu0 0.0
    %381 = vmatprep.subr.mxu0 0.0
    %382 = vmatpush1.msra.mxu0 0.0
    %383 = vmatprep.subr.mxu0 0.0
    %384 = vmatpush1.msra.mxu0 0.0
    %385 = vmatprep.subr.mxu0 0.0
    %386 = vmatpush1.msra.mxu0 0.0
    %387 = vmatprep.subr.mxu0 0.0
    %388 = vmatpush1.msra.mxu0 0.0
    %389 = vmatprep.subr.mxu0 0.0
    %390 = vmatpush1.msra.mxu0 0.0
    %391 = vmatprep.subr.mxu0 0.0
    %392 = vmatpush1.msra.mxu0 0.0
    %393 = vmatprep.subr.mxu0 0.0
    %394 = vmatpush1.msra.mxu0 0.0
    %395 = vmatprep.subr.mxu0 0.0
    %396 = vmatpush1.msra.mxu0 0.0
    %397 = vmatprep.subr.mxu0 0.0
    %398 = vmatpush1.msra.mxu0 0.0
    %399 = vmatprep.subr.mxu0 0.0
    %400 = vmatpush1.msra.mxu0 0.0
    %401 = vmatprep.subr.mxu0 0.0
    %402 = vmatpush1.msra.mxu0 0.0
    %403 = vmatprep.subr.mxu0 0.0
    %404 = vmatpush1.msra.mxu0 0.0
    %405 = vmatprep.subr.mxu0 0.0
    %406 = vmatpush1.msra.mxu0 0.0
    %407 = vmatprep.subr.mxu0 0.0
    %408 = vmatpush1.msra.mxu0 0.0
    %409 = vmatprep.subr.mxu0 0.0
    %410 = vmatpush1.msra.mxu0 0.0
    %411 = vmatprep.subr.mxu0 0.0
    %412 = vmatpush1.msra.mxu0 0.0
    %413 = vmatprep.subr.mxu0 0.0
    %414 = vmatpush1.msra.mxu0 0.0
    %415 = vmatprep.subr.mxu0 0.0
    %416 = vmatpush1.msra.mxu0 0.0
    %417 = vmatprep.subr.mxu0 0.0
    %418 = vmatpush1.msra.mxu0 0.0
    %419 = vmatprep.subr.mxu0 0.0
    %420 = vmatpush1.msra.mxu0 0.0
    %421 = vmatprep.subr.mxu0 0.0
    %422 = vmatpush1.msra.mxu0 0.0
    %423 = vmatprep.subr.mxu0 0.0
    %424 = vmatpush1.msra.mxu0 0.0
    %425 = vmatprep.subr.mxu0 0.0
    %426 = vmatpush1.msra.mxu0 0.0
    %427 = vmatprep.subr.mxu0 0.0
    %428 = vmatpush1.msra.mxu0 0.0
    %429 = vmatprep.subr.mxu0 0.0
    %430 = vmatpush1.msra.mxu0 0.0
    %431 = vmatprep.mubr.f32.mxu0 0.0
    %432 = vmatmul.mubr.f32.gmra.mrb[0].mxu0 %v365
    %v433 = vpop.f32.mrb[0].mxu0
    %v434 = vadd.f32 0.0, %v433
    %v435 = vpop.f32.mrb[0].mxu0
    %436 = vdwg.mxu0
    %v437 = vmul.f32 %v334, %v334
    %v438 = vmul.f32 %v335, %v335
    %v439 = vmul.f32 %v336, %v336
    %v440 = vmul.f32 %v337, %v337
    %441 = vmatprep.subr.mxu0 0.0
    %442 = vmatpush1.msra.mxu0 %v437
    %443 = vmatprep.subr.mxu0 0.0
    %444 = vmatpush1.msra.mxu0 %v438
    %445 = vmatprep.subr.mxu0 0.0
    %446 = vmatpush1.msra.mxu0 %v439
    %447 = vmatprep.subr.mxu0 0.0
    %448 = vmatpush1.msra.mxu0 %v440
    %449 = vmatprep.subr.mxu0 0.0
    %450 = vmatpush1.msra.mxu0 0.0
    %451 = vmatprep.subr.mxu0 0.0
    %452 = vmatpush1.msra.mxu0 0.0
    %453 = vmatprep.subr.mxu0 0.0
    %454 = vmatpush1.msra.mxu0 0.0
    %455 = vmatprep.subr.mxu0 0.0
    %456 = vmatpush1.msra.mxu0 0.0
    %457 = vmatprep.subr.mxu0 0.0
    %458 = vmatpush1.msra.mxu0 0.0
    %459 = vmatprep.subr.mxu0 0.0
    %460 = vmatpush1.msra.mxu0 0.0
    %461 = vmatprep.subr.mxu0 0.0
    %462 = vmatpush1.msra.mxu0 0.0
    %463 = vmatprep.subr.mxu0 0.0
    %464 = vmatpush1.msra.mxu0 0.0
    %465 = vmatprep.subr.mxu0 0.0
    %466 = vmatpush1.msra.mxu0 0.0
    %467 = vmatprep.subr.mxu0 0.0
    %468 = vmatpush1.msra.mxu0 0.0
    %469 = vmatprep.subr.mxu0 0.0
    %470 = vmatpush1.msra.mxu0 0.0
    %471 = vmatprep.subr.mxu0 0.0
    %472 = vmatpush1.msra.mxu0 0.0
    %473 = vmatprep.subr.mxu0 0.0
    %474 = vmatpush1.msra.mxu0 0.0
    %475 = vmatprep.subr.mxu0 0.0
    %476 = vmatpush1.msra.mxu0 0.0
    %477 = vmatprep.subr.mxu0 0.0
    %478 = vmatpush1.msra.mxu0 0.0
    %479 = vmatprep.subr.mxu0 0.0
    %480 = vmatpush1.msra.mxu0 0.0
    %481 = vmatprep.subr.mxu0 0.0
    %482 = vmatpush1.msra.mxu0 0.0
    %483 = vmatprep.subr.mxu0 0.0
    %484 = vmatpush1.msra.mxu0 0.0
    %485 = vmatprep.subr.mxu0 0.0
    %486 = vmatpush1.msra.mxu0 0.0
    %487 = vmatprep.subr.mxu0 0.0
    %488 = vmatpush1.msra.mxu0 0.0
    %489 = vmatprep.subr.mxu0 0.0
    %490 = vmatpush1.msra.mxu0 0.0
    %491 = vmatprep.subr.mxu0 0.0
    %492 = vmatpush1.msra.mxu0 0.0
    %493 = vmatprep.subr.mxu0 0.0
    %494 = vmatpush1.msra.mxu0 0.0
    %495 = vmatprep.subr.mxu0 0.0
    %496 = vmatpush1.msra.mxu0 0.0
    %497 = vmatprep.subr.mxu0 0.0
    %498 = vmatpush1.msra.mxu0 0.0
    %499 = vmatprep.subr.mxu0 0.0
    %500 = vmatpush1.msra.mxu0 0.0
    %501 = vmatprep.subr.mxu0 0.0
    %502 = vmatpush1.msra.mxu0 0.0
    %503 = vmatprep.subr.mxu0 0.0
    %504 = vmatpush1.msra.mxu0 0.0
    %505 = vmatprep.mubr.f32.mxu0 0.0
    %506 = vmatmul.mubr.f32.gmra.mrb[0].mxu0 %v365
    %v507 = vpop.f32.mrb[0].mxu0
    %v508 = vadd.f32 0.0, %v507
    %v509 = vpop.f32.mrb[0].mxu0
    %510 = vdwg.mxu0
    %v512 = vrot.slane %v508, 7
    %vm514 = vcmask 1040384
    %v515 = vsel %vm514, %v434, %v512
    %v516 = vadd.f32 %v339, %v515
    %vm517 = vcmask 58368
    %518 = vst.msk [vmem:[#allocation2] sm:$0x3] %vm517, %v516
    // Predicated region
    $region14: #{tpu_custom_call.1} parent=1 // pred_check
      _
    $region15: #{tpu_custom_call.1} parent=1 // pred_check_branch
      %520 = sbr.rel (0) target = $region17
    $region16: #{tpu_custom_call.1} parent=1 // pred_region
      %s522 = ssub.s32 32, 32
      %523 = vsyncadd [#allocation3], %s522
      %s525 = sshll.u32 [#allocation2], 4
      %s526 = int_to_ptr.vmem [resolvable:$true] %s525
      %528 = dma.vmem_to_hbm [thread:$0]  %s526, 32, %s2, [#allocation3]
    $region17: #{tpu_custom_call.1} parent=1 // pred_fallthru
      _
    // Predicated region
    $region18: #{tpu_custom_call.1} parent=1 // pred_check
      _
    $region19: #{tpu_custom_call.1} parent=1 // pred_check_branch
      %530 = sbr.rel (0) target = $region21
    $region20: #{tpu_custom_call.1} parent=1 // pred_region
      %531 = dma.done [#allocation3], 32
    $region21: #{tpu_custom_call.1} parent=1 // pred_fallthru
      _
    %532 = vsyncpa [#allocation3], 1

</llo_original>
